<compile_context>
chip_gen: v6e
topology: v6e:2x2x1
jax: 0.10.0
libtpu: 0.0.40
codegen_flags: <defaults>
</compile_context>

<pallas_src>
import jax
import jax.numpy as jnp
from jax.experimental import pallas as pl
from jax.experimental.pallas import tpu as pltpu

IN_FEATURES = 64
OUT_FEATURES = 128


def linear_kernel(x_ref, wt_ref, b_ref, o_ref):
    # MXU matmul with f32 accumulation + bias add on the f32 accumulator.
    acc = jnp.dot(x_ref[...], wt_ref[...], preferred_element_type=jnp.float32)
    o_ref[...] = (acc + b_ref[...]).astype(o_ref.dtype)


def _choose_tm(B):
    """Pick the batch row tile (static at trace time).

    - B <= 512: single program over the whole batch (no per-step overhead).
    - 512 < B <= 1024: two steps so both TensorCores stream on v7x.
    - Large B: biggest tile from {8192, 4096, 2048, 1024, 512} that still
      gives >= 4 grid steps (2 per TC on v7x), falling back to >= 2 steps.
      All multi-step tiles are multiples of 8, so ragged batches are handled
      by masked edge blocks (no padding pass over x, no slice copy of y).
    """
    if B <= 512:
        return B
    if B <= 1024:
        # Two steps; round the half-batch up to a sublane multiple.
        return pl.cdiv(pl.cdiv(B, 2), 8) * 8
    for steps_min in (4, 2):
        for tm in (8192, 4096, 2048, 1024, 512):
            if B >= steps_min * tm:
                return tm
    return 512  # unreachable for B > 1024, kept for safety


def linear_pallas(x, wt, b2, *, tm=None):
    """y = x @ wt + b with x:(B, K), wt:(K, N) pre-transposed, b2:(1, N)."""
    B, K = x.shape
    Kw, N = wt.shape
    assert K == Kw, f"in_features mismatch: {K} vs {Kw}"
    assert b2.shape == (1, N)

    if tm is None:
        tm = _choose_tm(B)

    # Ragged B is handled by Pallas' masked edge block: OOB rows of the last
    # x tile are garbage but only feed OOB (discarded) output rows.
    grid = (pl.cdiv(B, tm),)

    x_bytes = jnp.dtype(x.dtype).itemsize
    w_bytes = jnp.dtype(wt.dtype).itemsize
    cost = pl.CostEstimate(
        flops=2 * B * K * N,
        transcendentals=0,
        bytes_accessed=x_bytes * (B * K + B * N) + w_bytes * K * N + 4 * N,
    )

    return pl.pallas_call(
        linear_kernel,
        out_shape=jax.ShapeDtypeStruct((B, N), x.dtype),
        grid_spec=pltpu.PrefetchScalarGridSpec(
            num_scalar_prefetch=0,
            grid=grid,
            in_specs=[
                # x streams tile-by-tile (the only real HBM traffic per step).
                pl.BlockSpec((tm, K), lambda i: (i, 0)),
                # Constant index_map => weight & bias stay resident in VMEM;
                # Pallas skips the re-DMA when the block index is unchanged.
                pl.BlockSpec((K, N), lambda i: (0, 0)),
                pl.BlockSpec((1, N), lambda i: (0, 0)),
            ],
            # N=128 lane-dense output => unmasked full-width stores.
            out_specs=pl.BlockSpec((tm, N), lambda i: (i, 0)),
        ),
        compiler_params=pltpu.CompilerParams(
            dimension_semantics=("parallel",),
            # Headroom for tm=8192 double-buffered x+y (~12 MiB) on v5e's
            # 16 MiB default scoped limit; <= default on v6e/v7x.
            vmem_limit_bytes=32 * 1024 * 1024,
        ),
        cost_estimate=cost,
    )(x, wt, b2)


def init_linear_params(key, in_features=IN_FEATURES, out_features=OUT_FEATURES,
                       dtype=jnp.float32):
    """torch.nn.Linear-style init; layout work done ONCE, outside the hot path.

    `dtype` controls the streamed x/weight dtype (use jnp.bfloat16 to halve
    HBM bytes on this bandwidth-bound path); the bias stays f32 since it is
    added on the f32 accumulator and its traffic is negligible.
    """
    kw, kb = jax.random.split(key)
    bound = 1.0 / (in_features ** 0.5)
    w = jax.random.uniform(kw, (out_features, in_features),
                           minval=-bound, maxval=bound, dtype=jnp.float32)
    b = jax.random.uniform(kb, (out_features,),
                           minval=-bound, maxval=bound, dtype=jnp.float32)
    return {
        "w": w,                                     # torch layout (reference)
        "b": b,
        "wt": jnp.asarray(w.T, dtype=dtype),        # pre-transposed (K, N)
        "b2": b.reshape(1, out_features),           # pre-reshaped (1, N), f32
    }


if __name__ == "__main__":
    key = jax.random.PRNGKey(0)
    kx, kp = jax.random.split(key)
    params = init_linear_params(kp)

    # --- small-batch f32 check (matches the torch module exactly) ----------
    B, K, N = 8, IN_FEATURES, OUT_FEATURES
    x = jax.random.normal(kx, (B, K), dtype=jnp.float32)

    fwd = jax.jit(lambda xx: linear_pallas(xx, params["wt"], params["b2"]))
    y = fwd(x)
    jax.block_until_ready(y)

    y_ref = x @ params["w"].T + params["b"]
    assert y.shape == (B, N)
    assert jnp.allclose(y, y_ref, atol=1e-5, rtol=1e-5)

    # --- ragged-batch check: exercises the masked edge block (no pad/slice) -
    Br = 1030  # -> tm=512, grid=3, last block has 6 valid rows
    xr = jax.random.normal(jax.random.PRNGKey(1), (Br, K), dtype=jnp.float32)
    yr = jax.jit(lambda xx: linear_pallas(xx, params["wt"], params["b2"]))(xr)
    jax.block_until_ready(yr)
    yr_ref = xr @ params["w"].T + params["b"]
    assert yr.shape == (Br, N)
    assert jnp.allclose(yr, yr_ref, atol=1e-5, rtol=1e-5)

    # --- bf16 streaming path (halves HBM bytes; f32 accumulation) ----------
    params_bf16 = init_linear_params(kp, dtype=jnp.bfloat16)
    xb = x.astype(jnp.bfloat16)
    yb = jax.jit(lambda xx: linear_pallas(xx, params_bf16["wt"],
                                          params_bf16["b2"]))(xb)
    jax.block_until_ready(yb)
    assert jnp.allclose(yb.astype(jnp.float32), y_ref, atol=3e-2, rtol=3e-2)

    print("KERNEL_OK")
</pallas_src>

<mosaic_0001>
module attributes {stable_mosaic.version = 11 : i64} {
  func.func @linear_kernel(%arg0: i32, %arg1: memref<8x64xf32, #tpu.memory_space<vmem>>, %arg2: memref<64x128xf32, #tpu.memory_space<vmem>>, %arg3: memref<1x128xf32, #tpu.memory_space<vmem>>, %arg4: memref<8x128xf32, #tpu.memory_space<vmem>>) attributes {dimension_semantics = [#tpu.dimension_semantics<parallel>], iteration_bounds = array<i64: 1>, scalar_prefetch = 0 : i64, scratch_operands = 0 : i64, tpu.core_type = #tpu.core_type<tc>, window_params = [{transform_indices = @transform_0, window_bounds = array<i64: 8, 64>}, {pipeline_mode = #tpu.pipeline_mode<synchronous>, transform_indices = @transform_1, window_bounds = array<i64: 64, 128>}, {pipeline_mode = #tpu.pipeline_mode<synchronous>, transform_indices = @transform_2, window_bounds = array<i64: 1, 128>}, {transform_indices = @transform_3, window_bounds = array<i64: 8, 128>}]} {
    %c0 = arith.constant 0 : index
    %c0_0 = arith.constant 0 : index
    %0 = vector.load %arg1[%c0, %c0_0] : memref<8x64xf32, #tpu.memory_space<vmem>>, vector<8x64xf32>
    %c0_1 = arith.constant 0 : index
    %c0_2 = arith.constant 0 : index
    %1 = vector.load %arg2[%c0_1, %c0_2] : memref<64x128xf32, #tpu.memory_space<vmem>>, vector<64x128xf32>
    %cst = arith.constant dense<0.000000e+00> : vector<8x128xf32>
    %2 = tpu.matmul %0, %1, %cst {dimension_numbers = #tpu.dot_dimension_numbers<[1], [0], [0], [1], [0, 0, 1, 1], [], []>} : vector<8x64xf32>, vector<64x128xf32>, vector<8x128xf32> -> vector<8x128xf32>
    %c0_3 = arith.constant 0 : index
    %c0_4 = arith.constant 0 : index
    %3 = vector.load %arg3[%c0_3, %c0_4] : memref<1x128xf32, #tpu.memory_space<vmem>>, vector<1x128xf32>
    %4 = vector.broadcast %3 : vector<1x128xf32> to vector<8x128xf32>
    %5 = arith.addf %2, %4 : vector<8x128xf32>
    %c0_5 = arith.constant 0 : index
    %c0_6 = arith.constant 0 : index
    %6 = vector.load %arg4[%c0_5, %c0_6] : memref<8x128xf32, #tpu.memory_space<vmem>>, vector<8x128xf32>
    tpu.vector_store %arg4[%c0_5, %c0_6], %5 {strides = array<i32>} : memref<8x128xf32, #tpu.memory_space<vmem>>, vector<8x128xf32>,
    return
  }
  func.func @transform_0(%arg0: i32) -> (i32, i32) {
    %c0_i32 = arith.constant 0 : i32
    %c0_i32_0 = arith.constant 0 : i32
    return %arg0, %c0_i32 : i32, i32
  }
  func.func @transform_1(%arg0: i32) -> (i32, i32) {
    %c0_i32 = arith.constant 0 : i32
    %c0_i32_0 = arith.constant 0 : i32
    %c0_i32_1 = arith.constant 0 : i32
    return %c0_i32, %c0_i32_0 : i32, i32
  }
  func.func @transform_2(%arg0: i32) -> (i32, i32) {
    %c0_i32 = arith.constant 0 : i32
    %c0_i32_0 = arith.constant 0 : i32
    %c0_i32_1 = arith.constant 0 : i32
    return %c0_i32, %c0_i32_0 : i32, i32
  }
  func.func @transform_3(%arg0: i32) -> (i32, i32) {
    %c0_i32 = arith.constant 0 : i32
    %c0_i32_0 = arith.constant 0 : i32
    return %arg0, %c0_i32 : i32, i32
  }
}

</mosaic_0001>

<llo_original>
// kernel: _lambda_.1
$region0: #{_lambda_.1}
  #allocation0 [shape = 'u32[]', space=smem, size = 0x4, offset = 0x4, fixed_abs, tag = 'smem constant byte address 0x4 - core index']
  #allocation1 [shape = 'u32[144,128]{1,0:T(1,128)}', space=vmem, size = 0x12000, scoped, tag = 'internal scratch']
  %s0 = inlined_call_operand.hbm [shape: f32[8,64], index: 0, kind: input, shape index: {}]
  %s1 = inlined_call_operand.hbm [shape: f32[64,128], index: 1, kind: input, shape index: {}]
  %s2 = inlined_call_operand.vmem [shape: f32[1,128], index: 2, kind: input, shape index: {}]
  %s3 = inlined_call_operand.hbm [shape: f32[8,128], index: 3, kind: output, shape index: {}]
  %s4 = sld [smem:[#allocation0]]
  $region30: #{_lambda_.1} parent=0
    _
  %s6 = ssub.s32 1, %s4
  %s7 = scalar_select 0, %s6, %s4
  $region1: #{_lambda_.1} parent=0
    #allocation2 [shape = 'u8[4096]{0}', space=vmem, size = 0x1000, scoped, tag = 'input window, operand 0, single buffered']
    #allocation3 [shape = 's32[1]{0}', space=sflag, size = 0x4, scoped, tag = 'scoped memory for _lambda_.1']
    #allocation4 [shape = 's32[1]{0}', space=sflag, size = 0x4, scoped, tag = 'scoped memory for _lambda_.1']
    #allocation5 [shape = 'u8[32768]{0}', space=vmem, size = 0x8000, scoped, tag = 'input window, operand 1, single buffered']
    #allocation6 [shape = 's32[1]{0}', space=sflag, size = 0x4, scoped, tag = 'scoped memory for _lambda_.1']
    #allocation7 [shape = 'u8[4096]{0}', space=vmem, size = 0x1000, scoped, tag = 'output window, operand 0, single buffered']
    %8 = vsyncpa [#allocation3], 0
    %9 = vsyncpa [#allocation6], 0
    %10 = vsyncpa [#allocation4], 0
    // Predicated region
    $region2: #{_lambda_.1} parent=1 // pred_check
      _
    $region3: #{_lambda_.1} parent=1 // pred_check_branch
      %12 = sbr.rel (0) target = $region5
    $region4: #{_lambda_.1} parent=1 // pred_region
      %s14 = ssub.s32 128, 128
      %15 = vsyncadd [#allocation3], %s14
      %s17 = sshll.u32 [#allocation2], 4
      %s18 = int_to_ptr.vmem [resolvable:$true] %s17
      %20 = dma.hbm_to_vmem [thread:$0]  %s0, 128, %s18, [#allocation3]
    $region5: #{_lambda_.1} parent=1 // pred_fallthru
      _
    // Predicated region
    $region6: #{_lambda_.1} parent=1 // pred_check
      _
    $region7: #{_lambda_.1} parent=1 // pred_check_branch
      %22 = sbr.rel (0) target = $region9
    $region8: #{_lambda_.1} parent=1 // pred_region
      %s24 = ssub.s32 1024, 1024
      %25 = vsyncadd [#allocation6], %s24
      %s26 = sshll.u32 [#allocation5], 4
      %s27 = int_to_ptr.vmem [resolvable:$true] %s26
      %32 = dma.hbm_to_vmem [thread:$0]  %s1, 1024, %s27, [#allocation6], 128, 128, 8
    $region9: #{_lambda_.1} parent=1 // pred_fallthru
      _
    // Predicated region
    $region10: #{_lambda_.1} parent=1 // pred_check
      _
    $region11: #{_lambda_.1} parent=1 // pred_check_branch
      %34 = sbr.rel (0) target = $region13
    $region12: #{_lambda_.1} parent=1 // pred_region
      _
    $region13: #{_lambda_.1} parent=1 // pred_fallthru
      _
    // Predicated region
    $region14: #{_lambda_.1} parent=1 // pred_check
      _
    $region15: #{_lambda_.1} parent=1 // pred_check_branch
      %36 = sbr.rel (0) target = $region17
    $region16: #{_lambda_.1} parent=1 // pred_region
      %37 = dma.done [#allocation3], 128
    $region17: #{_lambda_.1} parent=1 // pred_fallthru
      _
    // Predicated region
    $region18: #{_lambda_.1} parent=1 // pred_check
      _
    $region19: #{_lambda_.1} parent=1 // pred_check_branch
      %39 = sbr.rel (0) target = $region21
    $region20: #{_lambda_.1} parent=1 // pred_region
      %40 = dma.done [#allocation6], 1024
    $region21: #{_lambda_.1} parent=1 // pred_fallthru
      _
    %v41 = vld [vmem:[#allocation2] sm:$0xff]
    %v42 = vld [vmem:[#allocation5] sm:$0xff]
    %v43 = vld [vmem:[#allocation5 + $0x8] sm:$0xff]
    %v44 = vld [vmem:[#allocation5 + $0x10] sm:$0xff]
    %v45 = vld [vmem:[#allocation5 + $0x18] sm:$0xff]
    %v46 = vld [vmem:[#allocation5 + $0x20] sm:$0xff]
    %v47 = vld [vmem:[#allocation5 + $0x28] sm:$0xff]
    %v48 = vld [vmem:[#allocation5 + $0x30] sm:$0xff]
    %v49 = vld [vmem:[#allocation5 + $0x38] sm:$0xff]
    %v50 = vld [vmem:[%s2] sm:$0x1]
    %v52 = vlaneseq
    %v53 = vshrl.u32 %v52, 7
    %v54 = vsub.s32 0, %v53
    %v55 = vrot.slane %v50, %v54
    %vm57 = vcmask 523264
    %v59 = vsel %vm57, %v41, 0
    %61 = vmatprep.subr.mxu0 0.0
    %62 = vmatpush1.msra.mxu0 0.0
    %63 = vmatprep.subr.mxu0 0.0
    %64 = vmatpush1.msra.mxu0 0.0
    %65 = vmatprep.subr.mxu0 0.0
    %66 = vmatpush1.msra.mxu0 0.0
    %67 = vmatprep.subr.mxu0 0.0
    %68 = vmatpush1.msra.mxu0 0.0
    %69 = vmatprep.subr.mxu0 0.0
    %70 = vmatpush1.msra.mxu0 0.0
    %71 = vmatprep.subr.mxu0 0.0
    %72 = vmatpush1.msra.mxu0 0.0
    %73 = vmatprep.subr.mxu0 0.0
    %74 = vmatpush1.msra.mxu0 0.0
    %75 = vmatprep.subr.mxu0 0.0
    %76 = vmatpush1.msra.mxu0 0.0
    %77 = vmatprep.subr.mxu0 0.0
    %78 = vmatpush1.msra.mxu0 %v49
    %79 = vmatprep.subr.mxu0 0.0
    %80 = vmatpush1.msra.mxu0 %v48
    %81 = vmatprep.subr.mxu0 0.0
    %82 = vmatpush1.msra.mxu0 %v47
    %83 = vmatprep.subr.mxu0 0.0
    %84 = vmatpush1.msra.mxu0 %v46
    %85 = vmatprep.subr.mxu0 0.0
    %86 = vmatpush1.msra.mxu0 %v45
    %87 = vmatprep.subr.mxu0 0.0
    %88 = vmatpush1.msra.mxu0 %v44
    %89 = vmatprep.subr.mxu0 0.0
    %90 = vmatpush1.msra.mxu0 %v43
    %91 = vmatprep.subr.mxu0 0.0
    %92 = vmatpush1.msra.mxu0 %v42
    %93 = vmatprep.subr.mxu0 0.0
    %94 = vmatpush2.msra.mxu0 0.0
    %95 = vmatprep.subr.mxu0 0.0
    %96 = vmatpush2.msra.mxu0 0.0
    %97 = vmatprep.subr.mxu0 0.0
    %98 = vmatpush2.msra.mxu0 0.0
    %99 = vmatprep.subr.mxu0 0.0
    %100 = vmatpush2.msra.mxu0 0.0
    %101 = vmatprep.subr.mxu0 0.0
    %102 = vmatpush2.msra.mxu0 0.0
    %103 = vmatprep.subr.mxu0 0.0
    %104 = vmatpush2.msra.mxu0 0.0
    %105 = vmatprep.subr.mxu0 0.0
    %106 = vmatpush2.msra.mxu0 0.0
    %107 = vmatprep.subr.mxu0 0.0
    %108 = vmatpush2.msra.mxu0 0.0
    %109 = vmatprep.subr.mxu0 0.0
    %110 = vmatpush2.msra.mxu0 0.0
    %111 = vmatprep.subr.mxu0 0.0
    %112 = vmatpush2.msra.mxu0 0.0
    %113 = vmatprep.subr.mxu0 0.0
    %114 = vmatpush2.msra.mxu0 0.0
    %115 = vmatprep.subr.mxu0 0.0
    %116 = vmatpush2.msra.mxu0 0.0
    %117 = vmatprep.subr.mxu0 0.0
    %118 = vmatpush2.msra.mxu0 0.0
    %119 = vmatprep.subr.mxu0 0.0
    %120 = vmatpush2.msra.mxu0 0.0
    %121 = vmatprep.subr.mxu0 0.0
    %122 = vmatpush2.msra.mxu0 0.0
    %123 = vmatprep.subr.mxu0 0.0
    %124 = vmatpush2.msra.mxu0 0.0
    %125 = vmatprep.mubr.f32.mxu0 0.0
    %126 = vmatmul.mubr.f32.gmra.mxu0 %v59
    %v127 = vpop.f32.mrf.mxu0
    %v128 = vadd.f32 %v55, %v127
    %v129 = vpop.f32.mrf.mxu0
    %130 = vdwg.mxu0
    %131 = vst [vmem:[#allocation7] sm:$0xff] %v128
    // Predicated region
    $region22: #{_lambda_.1} parent=1 // pred_check
      _
    $region23: #{_lambda_.1} parent=1 // pred_check_branch
      %133 = sbr.rel (0) target = $region25
    $region24: #{_lambda_.1} parent=1 // pred_region
      %s135 = ssub.s32 128, 128
      %136 = vsyncadd [#allocation4], %s135
      %s138 = sshll.u32 [#allocation7], 4
      %s139 = int_to_ptr.vmem [resolvable:$true] %s138
      %141 = dma.vmem_to_hbm [thread:$0]  %s139, 128, %s3, [#allocation4]
    $region25: #{_lambda_.1} parent=1 // pred_fallthru
      _
    // Predicated region
    $region26: #{_lambda_.1} parent=1 // pred_check
      _
    $region27: #{_lambda_.1} parent=1 // pred_check_branch
      %143 = sbr.rel (0) target = $region29
    $region28: #{_lambda_.1} parent=1 // pred_region
      %144 = dma.done [#allocation4], 128
    $region29: #{_lambda_.1} parent=1 // pred_fallthru
      _
    %145 = vsyncpa [#allocation3], 1
    %146 = vsyncpa [#allocation6], 1
    %147 = vsyncpa [#allocation4], 1

</llo_original>
